<compile_context>
chip_gen: v7x
topology: tpu7x:2x2x1
jax: 0.10.0
libtpu: 0.0.40
codegen_flags: <defaults>
</compile_context>

<pallas_src>
import math

import jax
import jax.numpy as jnp
from jax.experimental import pallas as pl
from jax.experimental.pallas import tpu as pltpu

BETA = 1.0
EPS = 1e-7
THRESHOLD = 0.5

# sigmoid(x) > THRESHOLD  <=>  x > logit(THRESHOLD)   (== 0.0 for THRESHOLD == 0.5)
_THRESH_LOGIT = float(math.log(THRESHOLD / (1.0 - THRESHOLD)))
# Padding value for the prediction tail: strictly below the logit threshold -> binarizes to 0.
_PR_PAD = _THRESH_LOGIT - 1.0

_LANES = 128
_MAX_BLOCK_ROWS = 4096   # (4096,128) f32 tile = 2 MiB per input per pipeline buffer
_MIN_BLOCK_ROWS = 512    # below this, per-step overhead beats the cost of padding


def _fscore_partials_kernel(pr_ref, gt_ref, out_ref):
    """Accumulate per-lane partials [tp, sum(pr_bin), sum(gt)] into the resident out block."""
    s = pl.program_id(1)

    @pl.when(s == 0)
    def _():
        out_ref[...] = jnp.zeros_like(out_ref)

    # Compare in the input's native dtype (logit(0.5) == 0.0 is exactly representable).
    pb = (pr_ref[...] > _THRESH_LOGIT).astype(jnp.float32)
    g = gt_ref[...].astype(jnp.float32)

    out_ref[0:1, :] += jnp.sum(g * pb, axis=0, keepdims=True)
    out_ref[1:2, :] += jnp.sum(pb, axis=0, keepdims=True)
    out_ref[2:3, :] += jnp.sum(g, axis=0, keepdims=True)


@jax.jit
def fscore_metric(y_pr, y_gt):
    """Returns scalar f-score (float32), matching FscoreMetric.forward."""
    # bool masks travel as int8 (1 byte) -- no wrapper-side f32 upcast (4x HBM traffic).
    if y_gt.dtype == jnp.bool_:
        y_gt = y_gt.astype(jnp.int8)

    pr_flat = jnp.reshape(y_pr, (-1,))
    gt_flat = jnp.reshape(y_gt, (-1,))
    n = pr_flat.shape[0]

    # Sublane alignment required for non-full blocks: 8 (4B), 16 (2B), 32 (1B dtypes).
    min_itemsize = min(pr_flat.dtype.itemsize, gt_flat.dtype.itemsize)
    row_mult = max(8, 32 // min_itemsize)

    rows = -(-n // _LANES)
    rows = -(-rows // row_mult) * row_mult

    if rows <= _MAX_BLOCK_ROWS:
        block_rows, steps = rows, 1                      # whole problem in one block
    else:
        block_rows = None
        start = (_MAX_BLOCK_ROWS // row_mult) * row_mult
        for d in range(start, _MIN_BLOCK_ROWS - 1, -row_mult):
            if rows % d == 0:                            # divisor block -> no over-padding
                block_rows = d
                break
        if block_rows is None:
            # Rare pathological row count: pad up to a whole number of max-size blocks.
            block_rows = _MAX_BLOCK_ROWS
            rows = -(-rows // block_rows) * block_rows
        steps = rows // block_rows

    n_padded = rows * _LANES
    pad = n_padded - n
    if pad:
        # pr padded strictly below the logit threshold -> contributes 0 to every sum.
        pr_flat = jnp.pad(pr_flat, (0, pad), constant_values=_PR_PAD)
        gt_flat = jnp.pad(gt_flat, (0, pad), constant_values=0)

    pr2d = jnp.reshape(pr_flat, (rows, _LANES))
    gt2d = jnp.reshape(gt_flat, (rows, _LANES))

    # Leading "parallel" axis: splits the row-block stream across both TensorCores on
    # multi-core parts (v7x); degrades to a harmless sequential loop on v5e/v6e.
    if steps >= 2 and steps % 2 == 0:
        n_par, steps_per_core = 2, steps // 2
    else:
        n_par, steps_per_core = 1, steps

    def row_block(p, s):
        return (p * steps_per_core + s, 0)

    parts = pl.pallas_call(
        _fscore_partials_kernel,
        out_shape=jax.ShapeDtypeStruct((n_par, 8, _LANES), jnp.float32),
        grid=(n_par, steps_per_core),
        in_specs=[
            pl.BlockSpec((block_rows, _LANES), row_block),
            pl.BlockSpec((block_rows, _LANES), row_block),
        ],
        out_specs=pl.BlockSpec((None, 8, _LANES), lambda p, s: (p, 0, 0)),
        compiler_params=pltpu.CompilerParams(
            dimension_semantics=("parallel", "arbitrary"),
            vmem_limit_bytes=32 * 1024 * 1024,
        ),
    )(pr2d, gt2d)

    # Final cross-lane / cross-core reduction + score: tiny XLA ops on (n_par, 3, 128).
    tp = jnp.sum(parts[:, 0, :])
    sp = jnp.sum(parts[:, 1, :])
    sg = jnp.sum(parts[:, 2, :])
    fp = sp - tp
    fn = sg - tp
    b2 = BETA * BETA
    return ((1.0 + b2) * tp + EPS) / ((1.0 + b2) * tp + b2 * fn + fp + EPS)
    # TODO(synk): sweep pl.Buffered(3) on the input specs / 8192-row blocks once VMEM
    # headroom for the in-kernel f32 temporaries is measured on v7x.


def _fscore_ref(y_pr, y_gt, beta=BETA, eps=EPS, threshold=THRESHOLD):
    pr = jax.nn.sigmoid(y_pr.astype(jnp.float32))
    pr = (pr > threshold).astype(jnp.float32)
    gt = y_gt.astype(jnp.float32)
    tp = jnp.sum(gt * pr)
    fp = jnp.sum(pr) - tp
    fn = jnp.sum(gt) - tp
    b2 = beta * beta
    return ((1.0 + b2) * tp + eps) / ((1.0 + b2) * tp + b2 * fn + fp + eps)


if __name__ == "__main__":
    key = jax.random.PRNGKey(0)
    keys = jax.random.split(key, 10)

    # 1) Primary: NCHW logits + binary mask (single-block fast path).
    y_pr = jax.random.normal(keys[0], (2, 4, 16, 16), dtype=jnp.float32)
    y_gt = (jax.random.uniform(keys[1], (2, 4, 16, 16)) > 0.5).astype(jnp.float32)
    score = fscore_metric(y_pr, y_gt)
    jax.block_until_ready(score)
    ref = _fscore_ref(y_pr, y_gt)
    assert jnp.allclose(score, ref, atol=1e-5, rtol=1e-5), (score, ref)

    # 2) Large, 4096-row-divisible: multi-step streaming + 2-way parallel partials.
    y_pr2 = jax.random.normal(keys[2], (8, 4, 256, 256), dtype=jnp.float32)
    y_gt2 = (jax.random.uniform(keys[3], (8, 4, 256, 256)) > 0.5).astype(jnp.float32)
    score2 = fscore_metric(y_pr2, y_gt2)
    jax.block_until_ready(score2)
    ref2 = _fscore_ref(y_pr2, y_gt2)
    assert jnp.allclose(score2, ref2, atol=1e-5, rtol=1e-5), (score2, ref2)

    # 3) Medium, rows not divisible by 4096: divisor-sized block (3072) + parallel axis.
    y_pr3 = jax.random.normal(keys[4], (3, 4, 256, 256), dtype=jnp.float32)
    y_gt3 = (jax.random.uniform(keys[5], (3, 4, 256, 256)) > 0.5).astype(jnp.float32)
    score3 = fscore_metric(y_pr3, y_gt3)
    jax.block_until_ready(score3)
    ref3 = _fscore_ref(y_pr3, y_gt3)
    assert jnp.allclose(score3, ref3, atol=1e-5, rtol=1e-5), (score3, ref3)

    # 4) Ragged size + bool mask: tiny tail padding + int8 mask transport.
    y_pr4 = jax.random.normal(keys[6], (3, 5, 17, 13), dtype=jnp.float32)
    y_gt4 = jax.random.uniform(keys[7], (3, 5, 17, 13)) > 0.5
    score4 = fscore_metric(y_pr4, y_gt4)
    jax.block_until_ready(score4)
    ref4 = _fscore_ref(y_pr4, y_gt4.astype(jnp.float32))
    assert jnp.allclose(score4, ref4, atol=1e-5, rtol=1e-5), (score4, ref4)

    # 5) bf16 logits: native-dtype compare inside the kernel (no f32 upcast of the stream).
    y_pr5 = jax.random.normal(keys[8], (2, 4, 16, 16), dtype=jnp.bfloat16)
    y_gt5 = (jax.random.uniform(keys[9], (2, 4, 16, 16)) > 0.5).astype(jnp.float32)
    score5 = fscore_metric(y_pr5, y_gt5)
    jax.block_until_ready(score5)
    ref5 = _fscore_ref(y_pr5, y_gt5)
    assert jnp.allclose(score5, ref5, atol=1e-5, rtol=1e-5), (score5, ref5)

    print("KERNEL_OK")
</pallas_src>

<mosaic_0001>
module attributes {stable_mosaic.version = 11 : i64} {
  func.func @_fscore_partials_kernel(%arg0: i32, %arg1: i32, %arg2: memref<16x128xf32, #tpu.memory_space<vmem>>, %arg3: memref<16x128xf32, #tpu.memory_space<vmem>>, %arg4: memref<1x8x128xf32, #tpu.memory_space<vmem>>) attributes {dimension_semantics = [#tpu.dimension_semantics<parallel>, #tpu.dimension_semantics<arbitrary>], iteration_bounds = array<i64: 1, 1>, scalar_prefetch = 0 : i64, scratch_operands = 0 : i64, tpu.core_type = #tpu.core_type<tc>, window_params = [{transform_indices = @transform_0, window_bounds = array<i64: 16, 128>}, {transform_indices = @transform_1, window_bounds = array<i64: 16, 128>}, {transform_indices = @transform_2, window_bounds = array<i64: 1, 8, 128>}]} {
    %c0_i32 = arith.constant 0 : i32
    %0 = arith.cmpi eq, %arg1, %c0_i32 : i32
    %1 = arith.extui %0 : i1 to i32
    %c0_i32_0 = arith.constant 0 : i32
    %2 = arith.cmpi ne, %1, %c0_i32_0 : i32
    scf.if %2 {
      %cst_23 = arith.constant 0.000000e+00 : f32
      %34 = vector.broadcast %cst_23 : f32 to vector<8x128xf32>
      %c0_24 = arith.constant 0 : index
      %c0_25 = arith.constant 0 : index
      %c0_26 = arith.constant 0 : index
      %35 = vector.load %arg4[%c0_24, %c0_25, %c0_26] : memref<1x8x128xf32, #tpu.memory_space<vmem>>, vector<1x8x128xf32>
      %36 = vector.shape_cast %35 : vector<1x8x128xf32> to vector<8x128xf32>
      %37 = vector.shape_cast %34 : vector<8x128xf32> to vector<1x8x128xf32>
      tpu.vector_store %arg4[%c0_24, %c0_25, %c0_26], %37 {strides = array<i32>} : memref<1x8x128xf32, #tpu.memory_space<vmem>>, vector<1x8x128xf32>,
    } else {
    }
    %c0 = arith.constant 0 : index
    %c0_1 = arith.constant 0 : index
    %3 = vector.load %arg2[%c0, %c0_1] : memref<16x128xf32, #tpu.memory_space<vmem>>, vector<16x128xf32>
    %cst = arith.constant 0.000000e+00 : f32
    %4 = vector.broadcast %cst : f32 to vector<16x128xf32>
    %5 = arith.cmpf ogt, %3, %4 : vector<16x128xf32>
    %6 = arith.extui %5 : vector<16x128xi1> to vector<16x128xi32>
    %7 = arith.sitofp %6 : vector<16x128xi32> to vector<16x128xf32>
    %c0_2 = arith.constant 0 : index
    %c0_3 = arith.constant 0 : index
    %8 = vector.load %arg3[%c0_2, %c0_3] : memref<16x128xf32, #tpu.memory_space<vmem>>, vector<16x128xf32>
    %c0_4 = arith.constant 0 : index
    %c0_5 = arith.constant 0 : index
    %c0_6 = arith.constant 0 : index
    %9 = vector.load %arg4[%c0_4, %c0_5, %c0_6] : memref<1x8x128xf32, #tpu.memory_space<vmem>>, vector<1x1x128xf32>
    %10 = vector.shape_cast %9 : vector<1x1x128xf32> to vector<1x128xf32>
    %11 = arith.mulf %8, %7 : vector<16x128xf32>
    %cst_7 = arith.constant dense<0.000000e+00> : vector<128xf32>
    %12 = vector.multi_reduction <add>, %11, %cst_7 [0] : vector<16x128xf32> to vector<128xf32>
    %13 = vector.shape_cast %12 : vector<128xf32> to vector<1x128xf32>
    %14 = arith.addf %10, %13 : vector<1x128xf32>
    %c0_8 = arith.constant 0 : index
    %c0_9 = arith.constant 0 : index
    %c0_10 = arith.constant 0 : index
    %15 = vector.load %arg4[%c0_8, %c0_9, %c0_10] : memref<1x8x128xf32, #tpu.memory_space<vmem>>, vector<1x1x128xf32>
    %16 = vector.shape_cast %15 : vector<1x1x128xf32> to vector<1x128xf32>
    %17 = vector.shape_cast %14 : vector<1x128xf32> to vector<1x1x128xf32>
    tpu.vector_store %arg4[%c0_8, %c0_9, %c0_10], %17 {strides = array<i32>} : memref<1x8x128xf32, #tpu.memory_space<vmem>>, vector<1x1x128xf32>,
    %c0_11 = arith.constant 0 : index
    %c1 = arith.constant 1 : index
    %c0_12 = arith.constant 0 : index
    %18 = vector.load %arg4[%c0_11, %c1, %c0_12] : memref<1x8x128xf32, #tpu.memory_space<vmem>>, vector<1x1x128xf32>
    %19 = vector.shape_cast %18 : vector<1x1x128xf32> to vector<1x128xf32>
    %cst_13 = arith.constant dense<0.000000e+00> : vector<128xf32>
    %20 = vector.multi_reduction <add>, %7, %cst_13 [0] : vector<16x128xf32> to vector<128xf32>
    %21 = vector.shape_cast %20 : vector<128xf32> to vector<1x128xf32>
    %22 = arith.addf %19, %21 : vector<1x128xf32>
    %c0_14 = arith.constant 0 : index
    %c1_15 = arith.constant 1 : index
    %c0_16 = arith.constant 0 : index
    %23 = vector.load %arg4[%c0_14, %c1_15, %c0_16] : memref<1x8x128xf32, #tpu.memory_space<vmem>>, vector<1x1x128xf32>
    %24 = vector.shape_cast %23 : vector<1x1x128xf32> to vector<1x128xf32>
    %25 = vector.shape_cast %22 : vector<1x128xf32> to vector<1x1x128xf32>
    tpu.vector_store %arg4[%c0_14, %c1_15, %c0_16], %25 {strides = array<i32>} : memref<1x8x128xf32, #tpu.memory_space<vmem>>, vector<1x1x128xf32>,
    %c0_17 = arith.constant 0 : index
    %c2 = arith.constant 2 : index
    %c0_18 = arith.constant 0 : index
    %26 = vector.load %arg4[%c0_17, %c2, %c0_18] : memref<1x8x128xf32, #tpu.memory_space<vmem>>, vector<1x1x128xf32>
    %27 = vector.shape_cast %26 : vector<1x1x128xf32> to vector<1x128xf32>
    %cst_19 = arith.constant dense<0.000000e+00> : vector<128xf32>
    %28 = vector.multi_reduction <add>, %8, %cst_19 [0] : vector<16x128xf32> to vector<128xf32>
    %29 = vector.shape_cast %28 : vector<128xf32> to vector<1x128xf32>
    %30 = arith.addf %27, %29 : vector<1x128xf32>
    %c0_20 = arith.constant 0 : index
    %c2_21 = arith.constant 2 : index
    %c0_22 = arith.constant 0 : index
    %31 = vector.load %arg4[%c0_20, %c2_21, %c0_22] : memref<1x8x128xf32, #tpu.memory_space<vmem>>, vector<1x1x128xf32>
    %32 = vector.shape_cast %31 : vector<1x1x128xf32> to vector<1x128xf32>
    %33 = vector.shape_cast %30 : vector<1x128xf32> to vector<1x1x128xf32>
    tpu.vector_store %arg4[%c0_20, %c2_21, %c0_22], %33 {strides = array<i32>} : memref<1x8x128xf32, #tpu.memory_space<vmem>>, vector<1x1x128xf32>,
    return
  }
  func.func @transform_0(%arg0: i32, %arg1: i32) -> (i32, i32) {
    %c1_i32 = arith.constant 1 : i32
    %0 = arith.muli %arg0, %c1_i32 : i32
    %1 = arith.addi %0, %arg1 : i32
    %c0_i32 = arith.constant 0 : i32
    %c0_i32_0 = arith.constant 0 : i32
    return %1, %c0_i32 : i32, i32
  }
  func.func @transform_1(%arg0: i32, %arg1: i32) -> (i32, i32) {
    %c1_i32 = arith.constant 1 : i32
    %0 = arith.muli %arg0, %c1_i32 : i32
    %1 = arith.addi %0, %arg1 : i32
    %c0_i32 = arith.constant 0 : i32
    %c0_i32_0 = arith.constant 0 : i32
    return %1, %c0_i32 : i32, i32
  }
  func.func @transform_2(%arg0: i32, %arg1: i32) -> (i32, i32, i32) {
    %c0_i32 = arith.constant 0 : i32
    %c0_i32_0 = arith.constant 0 : i32
    %c0_i32_1 = arith.constant 0 : i32
    return %arg0, %c0_i32, %c0_i32_0 : i32, i32, i32
  }
}

</mosaic_0001>

<llo_original>
// kernel: fscore_metric.1
$region0: #{fscore_metric.1}
  #allocation0 [shape = 'u32[]', space=smem, size = 0x4, offset = 0x4, fixed_abs, tag = 'smem constant byte address 0x4 - core index']
  #allocation1 [shape = 'u32[144,128]{1,0:T(1,128)}', space=vmem, size = 0x12000, scoped, tag = 'internal scratch']
  %s0 = inlined_call_operand.vmem [shape: f32[16,128], index: 0, kind: input, shape index: {}]
  %s1 = inlined_call_operand.vmem [shape: f32[16,128], index: 1, kind: input, shape index: {}]
  %s2 = inlined_call_operand.vmem [shape: f32[1,8,128], index: 2, kind: output, shape index: {}]
  %s3 = sld [smem:[#allocation0]]
  $region22: #{fscore_metric.1} parent=0
    _
  %s5 = ssub.s32 1, %s3
  %s6 = scalar_select 0, %s5, %s3
  // Predicated region
  $region2: #{fscore_metric.1} parent=0 // pred_check
    _
  $region3: #{fscore_metric.1} parent=0 // pred_check_branch
    %8 = sbr.rel (0) target = $region5
  $region4: #{fscore_metric.1} parent=0 // pred_region
    %s9 = sadd.s32 0, 0
    %s10 = smul.u32 2, %s9
    %p11 = scmp.lt.s32.totalorder %s10, 1
    %s12 = scalar_select %p11, %s10, 1
    %s13 = smul.addr %s12, 8
    %s14 = scalar_lea.vmem %s0, %s13
    %s15 = sadd.s32 0, 0
    %s16 = smul.u32 2, %s15
  $region5: #{fscore_metric.1} parent=0 // pred_fallthru
    _
  // Predicated region
  $region6: #{fscore_metric.1} parent=0 // pred_check
    _
  $region7: #{fscore_metric.1} parent=0 // pred_check_branch
    %18 = sbr.rel (0) target = $region9
  $region8: #{fscore_metric.1} parent=0 // pred_region
    %s19 = sadd.s32 0, 0
    %s20 = smul.u32 2, %s19
    %p21 = scmp.lt.s32.totalorder %s20, 1
    %s22 = scalar_select %p21, %s20, 1
    %s23 = smul.addr %s22, 8
    %s24 = scalar_lea.vmem %s1, %s23
    %s25 = sadd.s32 0, 0
    %s26 = smul.u32 2, %s25
  $region9: #{fscore_metric.1} parent=0 // pred_fallthru
    _
  %s27 = sadd.s32 0, 0
  %s28 = smul.u32 2, %s27
  %p29 = scmp.lt.s32.totalorder %s28, 1
  %s30 = scalar_select %p29, %s28, 1
  %s31 = smul.addr %s30, 8
  %s32 = scalar_lea.vmem %s0, %s31
  %s33 = sadd.s32 0, 0
  %s34 = smul.u32 2, %s33
  %p35 = scmp.lt.s32.totalorder %s34, 1
  %s36 = scalar_select %p35, %s34, 1
  %s37 = smul.addr %s36, 8
  %s38 = scalar_lea.vmem %s1, %s37
  %s39 = sadd.s32 0, 0
  %s40 = smul.u32 2, %s39
  %p41 = scmp.lt.s32.totalorder %s40, 1
  %s42 = scalar_select %p41, %s40, 1
  %s43 = smul.addr %s42, 8
  %s44 = scalar_lea.vmem %s0, %s43
  %s45 = sadd.s32 0, 0
  %s46 = smul.u32 2, %s45
  %s47 = sadd.s32 0, 0
  %s48 = smul.u32 2, %s47
  %p49 = scmp.lt.s32.totalorder %s48, 1
  %s50 = scalar_select %p49, %s48, 1
  %s51 = smul.addr %s50, 8
  %s52 = scalar_lea.vmem %s1, %s51
  %s53 = sadd.s32 0, 0
  %s54 = smul.u32 2, %s53
  %p55 = scmp.eq.s32.totalorder 0, 0
  // Predicated region
  $region10: #{fscore_metric.1} parent=0 // pred_check
    %p56 = pneg %p55
  $region11: #{fscore_metric.1} parent=0 // pred_check_branch
    %58 = sbr.rel (%p56) target = $region13
  $region12: #{fscore_metric.1} parent=0 // pred_region
    %59 = vst [vmem:[%s2] sm:$0xff] 0.0
  $region13: #{fscore_metric.1} parent=0 // pred_fallthru
    _
  %v60 = vld [vmem:[%s44] sm:$0xff]
  %v61 = vld [vmem:[%s44 + $0x8] sm:$0xff]
  %vm62 = vcmp.gt.f32.partialorder %v60, 0.0
  %vm63 = vcmp.gt.f32.partialorder %v61, 0.0
  %v64 = vsel %vm62, 1, 0
  %v65 = vsel %vm63, 1, 0
  %v66 = vcvt.s32.f32 %v64
  %v67 = vcvt.s32.f32 %v65
  %v68 = vld [vmem:[%s52] sm:$0xff]
  %v69 = vld [vmem:[%s52 + $0x8] sm:$0xff]
  %v70 = vld [vmem:[%s2] sm:$0x1]
  %v71 = vmul.f32 %v68, %v66
  %v72 = vmul.f32 %v69, %v67
  %v73 = vadd.f32 %v71, %v72
  %v74 = vrot.slane %v73, 4
  %v75 = vadd.f32 %v73, %v74
  %v76 = vrot.slane %v75, 2
  %v77 = vadd.f32 %v75, %v76
  %v78 = vrot.slane %v77, 1
  %v79 = vadd.f32 %v77, %v78
  %v80 = vadd.f32 %v70, %v79
  %81 = vst [vmem:[%s2] sm:$0x1] %v80
  %v82 = vld [vmem:[%s2 + $0x1] sm:$0x1]
  %v83 = vadd.f32 %v66, %v67
  %v84 = vrot.slane %v83, 4
  %v85 = vadd.f32 %v83, %v84
  %v86 = vrot.slane %v85, 2
  %v87 = vadd.f32 %v85, %v86
  %v88 = vrot.slane %v87, 1
  %v89 = vadd.f32 %v87, %v88
  %v90 = vadd.f32 %v82, %v89
  %91 = vst [vmem:[%s2 + $0x1] sm:$0x1] %v90
  %v92 = vld [vmem:[%s2 + $0x2] sm:$0x1]
  %v93 = vadd.f32 %v68, %v69
  %v94 = vrot.slane %v93, 4
  %v95 = vadd.f32 %v93, %v94
  %v96 = vrot.slane %v95, 2
  %v97 = vadd.f32 %v95, %v96
  %v98 = vrot.slane %v97, 1
  %v99 = vadd.f32 %v97, %v98
  %v100 = vadd.f32 %v92, %v99
  %101 = vst [vmem:[%s2 + $0x2] sm:$0x1] %v100
  // Predicated region
  $region14: #{fscore_metric.1} parent=0 // pred_check
    _
  $region15: #{fscore_metric.1} parent=0 // pred_check_branch
    %103 = sbr.rel (0) target = $region17
  $region16: #{fscore_metric.1} parent=0 // pred_region
    _
  $region17: #{fscore_metric.1} parent=0 // pred_fallthru
    _
  // Predicated region
  $region18: #{fscore_metric.1} parent=0 // pred_check
    _
  $region19: #{fscore_metric.1} parent=0 // pred_check_branch
    %105 = sbr.rel (0) target = $region21
  $region20: #{fscore_metric.1} parent=0 // pred_region
    _
  $region21: #{fscore_metric.1} parent=0 // pred_fallthru
    _

</llo_original>
